<compile_context>
chip_gen: v5e
topology: v5e:2x2
jax: 0.10.0
libtpu: 0.0.40
codegen_flags: <defaults>
</compile_context>

<pallas_src>
import jax
import jax.numpy as jnp
from jax.experimental import pallas as pl
from jax.experimental.pallas import tpu as pltpu


def _round_up(x, m):
    return (x + m - 1) // m * m


def cbow_kernel(p_ref, h_ref,
                w1p_ref, w1h_ref, w1a_ref, w1m_ref, b1_ref,
                w2_ref, b2_ref, w3_ref, b3_ref,
                out_ref):
    """One batch tile of the CBOW MLP head.

    p_ref/h_ref: (TB, E_pad) bf16 mean-pooled premise / hypothesis vectors.
    w1{p,h,a,m}: (E_pad, E_pad) bf16 row-blocks of lin1 (pre-split in wrapper,
                 so no lane-axis concat is needed).
    w2: (E_pad, E_pad) bf16, w3: (E_pad, C_pad) bf16.
    b1/b2: (1, E_pad) f32, b3: (1, C_pad) f32.
    out_ref: (TB, C_pad) f32 (lane-dense padded logits).
    """
    f32 = jnp.float32
    bf16 = jnp.bfloat16

    p_b = p_ref[...]                       # bf16
    h_b = h_ref[...]                       # bf16
    p = p_b.astype(f32)                    # elementwise feature math in f32
    h = h_b.astype(f32)                    # (v5e VPU has no bf16)
    d_b = jnp.abs(p - h).astype(bf16)      # |p - h|
    m_b = (p * h).astype(bf16)             # p * h

    # lin1 over the "concatenated" features, expressed as 4 summed matmuls.
    x = (jnp.dot(p_b, w1p_ref[...], preferred_element_type=f32)
         + jnp.dot(h_b, w1h_ref[...], preferred_element_type=f32)
         + jnp.dot(d_b, w1a_ref[...], preferred_element_type=f32)
         + jnp.dot(m_b, w1m_ref[...], preferred_element_type=f32)
         + b1_ref[...])
    x = jnp.maximum(x, 0.0)
    # TODO(synk): training-mode dropout (p=0.2) omitted; inference semantics.

    x = jnp.dot(x.astype(bf16), w2_ref[...], preferred_element_type=f32) + b2_ref[...]
    x = jnp.maximum(x, 0.0)

    x = jnp.dot(x.astype(bf16), w3_ref[...], preferred_element_type=f32) + b3_ref[...]
    out_ref[...] = x.astype(out_ref.dtype)


def _prepare_padded_params(params, E, C, E_pad, C_pad):
    """Split lin1 into four blocks, zero-pad everything to lane-aligned shapes,
    cast weights to bf16 (biases stay f32, shaped (1, N))."""
    bf16 = jnp.bfloat16
    f32 = jnp.float32

    def pad2(a, r, c):
        return jnp.pad(a, ((0, r - a.shape[0]), (0, c - a.shape[1])))

    w1 = params["w1"]                      # (4E, E), stored (in, out)
    w1p = pad2(w1[0 * E:1 * E], E_pad, E_pad).astype(bf16)
    w1h = pad2(w1[1 * E:2 * E], E_pad, E_pad).astype(bf16)
    w1a = pad2(w1[2 * E:3 * E], E_pad, E_pad).astype(bf16)
    w1m = pad2(w1[3 * E:4 * E], E_pad, E_pad).astype(bf16)
    w2 = pad2(params["w2"], E_pad, E_pad).astype(bf16)
    w3 = pad2(params["w3"], E_pad, C_pad).astype(bf16)
    b1 = jnp.pad(params["b1"], (0, E_pad - E)).reshape(1, E_pad).astype(f32)
    b2 = jnp.pad(params["b2"], (0, E_pad - E)).reshape(1, E_pad).astype(f32)
    b3 = jnp.pad(params["b3"], (0, C_pad - C)).reshape(1, C_pad).astype(f32)
    return w1p, w1h, w1a, w1m, b1, w2, b2, w3, b3


def cbow_forward(params, premises, hypotheses, *, block_b=256):
    """params: dict with 'emb'(V,E), 'w1'(4E,E), 'b1'(E,), 'w2'(E,E), 'b2'(E,),
    'w3'(E,C), 'b3'(C,). premises/hypotheses: int32 (B, S). Returns (B, C) f32."""
    emb = params["emb"]
    B, _ = premises.shape
    E = emb.shape[1]
    C = params["w3"].shape[1]
    E_pad = _round_up(E, 128)
    C_pad = _round_up(C, 128)

    # Embedding gather + mean pool in the wrapper (mean is linear => exact).
    # Avoids materialising and round-tripping (B, S, E) through HBM; the kernel
    # only sees (B, E_pad) pooled vectors.
    # TODO(synk): for vocabularies too large to gather efficiently here, the
    # alternative is an in-kernel DMA row gather via scalar-prefetched ids.
    p = emb[premises].mean(axis=1)         # (B, E) f32
    h = emb[hypotheses].mean(axis=1)       # (B, E) f32

    # Batch tile: multiple of 8 (f32 sublane); cap at block_b (v7x-VMEM safe).
    TB = min(block_b, _round_up(max(B, 1), 8))
    B_pad = _round_up(B, TB)

    bf16 = jnp.bfloat16
    p = jnp.pad(p, ((0, B_pad - B), (0, E_pad - E))).astype(bf16)
    h = jnp.pad(h, ((0, B_pad - B), (0, E_pad - E))).astype(bf16)

    w1p, w1h, w1a, w1m, b1, w2, b2, w3, b3 = _prepare_padded_params(
        params, E, C, E_pad, C_pad)

    grid = (pl.cdiv(B_pad, TB),)

    batch_spec = pl.BlockSpec((TB, E_pad), lambda i: (i, 0))
    const = lambda shape: pl.BlockSpec(shape, lambda i: (0, 0))

    flops = 2 * B_pad * E_pad * (4 * E_pad + E_pad + C_pad)
    bytes_accessed = (2 * B_pad * E_pad * 2                       # p, h (bf16)
                      + (5 * E_pad * E_pad + E_pad * C_pad) * 2   # weights (bf16)
                      + (2 * E_pad + C_pad) * 4                   # biases (f32)
                      + B_pad * C_pad * 4)                        # output (f32)

    out = pl.pallas_call(
        cbow_kernel,
        out_shape=jax.ShapeDtypeStruct((B_pad, C_pad), jnp.float32),
        grid=grid,
        in_specs=[
            batch_spec, batch_spec,                   # p, h
            const((E_pad, E_pad)), const((E_pad, E_pad)),   # w1p, w1h
            const((E_pad, E_pad)), const((E_pad, E_pad)),   # w1a, w1m
            const((1, E_pad)),                        # b1
            const((E_pad, E_pad)), const((1, E_pad)),       # w2, b2
            const((E_pad, C_pad)), const((1, C_pad)),       # w3, b3
        ],
        out_specs=pl.BlockSpec((TB, C_pad), lambda i: (i, 0)),
        compiler_params=pltpu.CompilerParams(
            dimension_semantics=("parallel",),
            vmem_limit_bytes=32 * 1024 * 1024,
        ),
        cost_estimate=pl.CostEstimate(
            flops=int(flops), transcendentals=0,
            bytes_accessed=int(bytes_accessed)),
    )(p, h, w1p, w1h, w1a, w1m, b1, w2, b2, w3, b3)

    return out[:B, :C]


def xavier_uniform(key, fan_in, fan_out):
    limit = jnp.sqrt(6.0 / (fan_in + fan_out))
    # PyTorch Linear weight is (out, in); we store transposed (in, out).
    return jax.random.uniform(key, (fan_in, fan_out), jnp.float32, -limit, limit)


def init_params(key, num_embeddings, embedding_dim, num_classes):
    k_emb, k1, k2, k3 = jax.random.split(key, 4)
    emb = jax.random.normal(k_emb, (num_embeddings, embedding_dim), jnp.float32)
    w1 = xavier_uniform(k1, 4 * embedding_dim, embedding_dim)
    w2 = xavier_uniform(k2, embedding_dim, embedding_dim)
    w3 = xavier_uniform(k3, embedding_dim, num_classes)
    return {
        "emb": emb,
        "w1": w1, "b1": jnp.zeros((embedding_dim,), jnp.float32),
        "w2": w2, "b2": jnp.zeros((embedding_dim,), jnp.float32),
        "w3": w3, "b3": jnp.zeros((num_classes,), jnp.float32),
    }


def cbow_reference_f32(params, premises, hypotheses):
    """Pure-f32 reference matching the PyTorch module exactly."""
    emb = params["emb"]
    p = emb[premises].mean(axis=1)
    h = emb[hypotheses].mean(axis=1)
    c = jnp.concatenate([p, h, jnp.abs(p - h), p * h], axis=1)
    x = jnp.maximum(c @ params["w1"] + params["b1"], 0.0)
    x = jnp.maximum(x @ params["w2"] + params["b2"], 0.0)
    return x @ params["w3"] + params["b3"]


def cbow_reference_bf16(params, premises, hypotheses):
    """Reference mirroring the kernel's bf16-MXU / f32-accumulate path."""
    f32, bf16 = jnp.float32, jnp.bfloat16
    emb = params["emb"]
    E = emb.shape[1]
    p_b = emb[premises].mean(axis=1).astype(bf16)
    h_b = emb[hypotheses].mean(axis=1).astype(bf16)
    p, h = p_b.astype(f32), h_b.astype(f32)
    d_b = jnp.abs(p - h).astype(bf16)
    m_b = (p * h).astype(bf16)
    w1 = params["w1"].astype(bf16)
    w1p, w1h, w1a, w1m = w1[:E], w1[E:2 * E], w1[2 * E:3 * E], w1[3 * E:]
    x = (jnp.dot(p_b, w1p, preferred_element_type=f32)
         + jnp.dot(h_b, w1h, preferred_element_type=f32)
         + jnp.dot(d_b, w1a, preferred_element_type=f32)
         + jnp.dot(m_b, w1m, preferred_element_type=f32)
         + params["b1"])
    x = jnp.maximum(x, 0.0)
    x = jnp.dot(x.astype(bf16), params["w2"].astype(bf16),
                preferred_element_type=f32) + params["b2"]
    x = jnp.maximum(x, 0.0)
    x = jnp.dot(x.astype(bf16), params["w3"].astype(bf16),
                preferred_element_type=f32) + params["b3"]
    return x


if __name__ == "__main__":
    key = jax.random.PRNGKey(0)
    k_params, k_prem, k_hyp = jax.random.split(key, 3)

    VOCAB = 50
    EMBED = 32
    NUM_CLASSES = 2
    BATCH = 4
    SEQ = 8

    params = init_params(k_params, VOCAB, EMBED, NUM_CLASSES)

    premises = jax.random.randint(k_prem, (BATCH, SEQ), 0, VOCAB, jnp.int32)
    hypotheses = jax.random.randint(k_hyp, (BATCH, SEQ), 0, VOCAB, jnp.int32)
    # masks exist in the PyTorch signature but are unused by CBOW.

    out = cbow_forward(params, premises, hypotheses)
    out = jax.block_until_ready(out)
    assert out.shape == (BATCH, NUM_CLASSES)

    # Tight check against a reference that mirrors the kernel's bf16/f32 path.
    ref_q = cbow_reference_bf16(params, premises, hypotheses)
    assert jnp.allclose(out, ref_q, atol=1e-3, rtol=1e-3), \
        f"max diff vs bf16 ref: {jnp.max(jnp.abs(out - ref_q))}"

    # Loose sanity check against the exact f32 PyTorch-equivalent math.
    ref_f = cbow_reference_f32(params, premises, hypotheses)
    assert jnp.max(jnp.abs(out - ref_f)) < 5e-2, \
        f"max diff vs f32 ref: {jnp.max(jnp.abs(out - ref_f))}"

    print("KERNEL_OK")
</pallas_src>

<mosaic_0001>
module attributes {stable_mosaic.version = 11 : i64} {
  func.func @cbow_kernel(%arg0: i32, %arg1: memref<8x128xbf16, #tpu.memory_space<vmem>>, %arg2: memref<8x128xbf16, #tpu.memory_space<vmem>>, %arg3: memref<128x128xbf16, #tpu.memory_space<vmem>>, %arg4: memref<128x128xbf16, #tpu.memory_space<vmem>>, %arg5: memref<128x128xbf16, #tpu.memory_space<vmem>>, %arg6: memref<128x128xbf16, #tpu.memory_space<vmem>>, %arg7: memref<1x128xf32, #tpu.memory_space<vmem>>, %arg8: memref<128x128xbf16, #tpu.memory_space<vmem>>, %arg9: memref<1x128xf32, #tpu.memory_space<vmem>>, %arg10: memref<128x128xbf16, #tpu.memory_space<vmem>>, %arg11: memref<1x128xf32, #tpu.memory_space<vmem>>, %arg12: memref<8x128xf32, #tpu.memory_space<vmem>>) attributes {dimension_semantics = [#tpu.dimension_semantics<parallel>], iteration_bounds = array<i64: 1>, scalar_prefetch = 0 : i64, scratch_operands = 0 : i64, tpu.core_type = #tpu.core_type<tc>, window_params = [{transform_indices = @transform_0, window_bounds = array<i64: 8, 128>}, {transform_indices = @transform_1, window_bounds = array<i64: 8, 128>}, {pipeline_mode = #tpu.pipeline_mode<synchronous>, transform_indices = @transform_2, window_bounds = array<i64: 128, 128>}, {pipeline_mode = #tpu.pipeline_mode<synchronous>, transform_indices = @transform_3, window_bounds = array<i64: 128, 128>}, {pipeline_mode = #tpu.pipeline_mode<synchronous>, transform_indices = @transform_4, window_bounds = array<i64: 128, 128>}, {pipeline_mode = #tpu.pipeline_mode<synchronous>, transform_indices = @transform_5, window_bounds = array<i64: 128, 128>}, {pipeline_mode = #tpu.pipeline_mode<synchronous>, transform_indices = @transform_6, window_bounds = array<i64: 1, 128>}, {pipeline_mode = #tpu.pipeline_mode<synchronous>, transform_indices = @transform_7, window_bounds = array<i64: 128, 128>}, {pipeline_mode = #tpu.pipeline_mode<synchronous>, transform_indices = @transform_8, window_bounds = array<i64: 1, 128>}, {pipeline_mode = #tpu.pipeline_mode<synchronous>, transform_indices = @transform_9, window_bounds = array<i64: 128, 128>}, {pipeline_mode = #tpu.pipeline_mode<synchronous>, transform_indices = @transform_10, window_bounds = array<i64: 1, 128>}, {transform_indices = @transform_11, window_bounds = array<i64: 8, 128>}]} {
    %c0 = arith.constant 0 : index
    %c0_0 = arith.constant 0 : index
    %0 = vector.load %arg1[%c0, %c0_0] : memref<8x128xbf16, #tpu.memory_space<vmem>>, vector<8x128xbf16>
    %c0_1 = arith.constant 0 : index
    %c0_2 = arith.constant 0 : index
    %1 = vector.load %arg2[%c0_1, %c0_2] : memref<8x128xbf16, #tpu.memory_space<vmem>>, vector<8x128xbf16>
    %2 = arith.extf %0 : vector<8x128xbf16> to vector<8x128xf32>
    %3 = arith.extf %1 : vector<8x128xbf16> to vector<8x128xf32>
    %4 = arith.subf %2, %3 : vector<8x128xf32>
    %5 = math.absf %4 : vector<8x128xf32>
    %6 = arith.truncf %5 : vector<8x128xf32> to vector<8x128xbf16>
    %7 = arith.mulf %2, %3 : vector<8x128xf32>
    %8 = arith.truncf %7 : vector<8x128xf32> to vector<8x128xbf16>
    %c0_3 = arith.constant 0 : index
    %c0_4 = arith.constant 0 : index
    %9 = vector.load %arg3[%c0_3, %c0_4] : memref<128x128xbf16, #tpu.memory_space<vmem>>, vector<128x128xbf16>
    %cst = arith.constant dense<0.000000e+00> : vector<8x128xf32>
    %10 = tpu.matmul %0, %9, %cst {dimension_numbers = #tpu.dot_dimension_numbers<[1], [0], [0], [1], [0, 0, 1, 1], [], []>} : vector<8x128xbf16>, vector<128x128xbf16>, vector<8x128xf32> -> vector<8x128xf32>
    %c0_5 = arith.constant 0 : index
    %c0_6 = arith.constant 0 : index
    %11 = vector.load %arg4[%c0_5, %c0_6] : memref<128x128xbf16, #tpu.memory_space<vmem>>, vector<128x128xbf16>
    %cst_7 = arith.constant dense<0.000000e+00> : vector<8x128xf32>
    %12 = tpu.matmul %1, %11, %cst_7 {dimension_numbers = #tpu.dot_dimension_numbers<[1], [0], [0], [1], [0, 0, 1, 1], [], []>} : vector<8x128xbf16>, vector<128x128xbf16>, vector<8x128xf32> -> vector<8x128xf32>
    %13 = arith.addf %10, %12 : vector<8x128xf32>
    %c0_8 = arith.constant 0 : index
    %c0_9 = arith.constant 0 : index
    %14 = vector.load %arg5[%c0_8, %c0_9] : memref<128x128xbf16, #tpu.memory_space<vmem>>, vector<128x128xbf16>
    %cst_10 = arith.constant dense<0.000000e+00> : vector<8x128xf32>
    %15 = tpu.matmul %6, %14, %cst_10 {dimension_numbers = #tpu.dot_dimension_numbers<[1], [0], [0], [1], [0, 0, 1, 1], [], []>} : vector<8x128xbf16>, vector<128x128xbf16>, vector<8x128xf32> -> vector<8x128xf32>
    %16 = arith.addf %13, %15 : vector<8x128xf32>
    %c0_11 = arith.constant 0 : index
    %c0_12 = arith.constant 0 : index
    %17 = vector.load %arg6[%c0_11, %c0_12] : memref<128x128xbf16, #tpu.memory_space<vmem>>, vector<128x128xbf16>
    %cst_13 = arith.constant dense<0.000000e+00> : vector<8x128xf32>
    %18 = tpu.matmul %8, %17, %cst_13 {dimension_numbers = #tpu.dot_dimension_numbers<[1], [0], [0], [1], [0, 0, 1, 1], [], []>} : vector<8x128xbf16>, vector<128x128xbf16>, vector<8x128xf32> -> vector<8x128xf32>
    %19 = arith.addf %16, %18 : vector<8x128xf32>
    %c0_14 = arith.constant 0 : index
    %c0_15 = arith.constant 0 : index
    %20 = vector.load %arg7[%c0_14, %c0_15] : memref<1x128xf32, #tpu.memory_space<vmem>>, vector<1x128xf32>
    %21 = vector.broadcast %20 : vector<1x128xf32> to vector<8x128xf32>
    %22 = arith.addf %19, %21 : vector<8x128xf32>
    %cst_16 = arith.constant 0.000000e+00 : f32
    %23 = vector.broadcast %cst_16 : f32 to vector<8x128xf32>
    %24 = arith.maximumf %22, %23 : vector<8x128xf32>
    %25 = arith.truncf %24 : vector<8x128xf32> to vector<8x128xbf16>
    %c0_17 = arith.constant 0 : index
    %c0_18 = arith.constant 0 : index
    %26 = vector.load %arg8[%c0_17, %c0_18] : memref<128x128xbf16, #tpu.memory_space<vmem>>, vector<128x128xbf16>
    %cst_19 = arith.constant dense<0.000000e+00> : vector<8x128xf32>
    %27 = tpu.matmul %25, %26, %cst_19 {dimension_numbers = #tpu.dot_dimension_numbers<[1], [0], [0], [1], [0, 0, 1, 1], [], []>} : vector<8x128xbf16>, vector<128x128xbf16>, vector<8x128xf32> -> vector<8x128xf32>
    %c0_20 = arith.constant 0 : index
    %c0_21 = arith.constant 0 : index
    %28 = vector.load %arg9[%c0_20, %c0_21] : memref<1x128xf32, #tpu.memory_space<vmem>>, vector<1x128xf32>
    %29 = vector.broadcast %28 : vector<1x128xf32> to vector<8x128xf32>
    %30 = arith.addf %27, %29 : vector<8x128xf32>
    %cst_22 = arith.constant 0.000000e+00 : f32
    %31 = vector.broadcast %cst_22 : f32 to vector<8x128xf32>
    %32 = arith.maximumf %30, %31 : vector<8x128xf32>
    %33 = arith.truncf %32 : vector<8x128xf32> to vector<8x128xbf16>
    %c0_23 = arith.constant 0 : index
    %c0_24 = arith.constant 0 : index
    %34 = vector.load %arg10[%c0_23, %c0_24] : memref<128x128xbf16, #tpu.memory_space<vmem>>, vector<128x128xbf16>
    %cst_25 = arith.constant dense<0.000000e+00> : vector<8x128xf32>
    %35 = tpu.matmul %33, %34, %cst_25 {dimension_numbers = #tpu.dot_dimension_numbers<[1], [0], [0], [1], [0, 0, 1, 1], [], []>} : vector<8x128xbf16>, vector<128x128xbf16>, vector<8x128xf32> -> vector<8x128xf32>
    %c0_26 = arith.constant 0 : index
    %c0_27 = arith.constant 0 : index
    %36 = vector.load %arg11[%c0_26, %c0_27] : memref<1x128xf32, #tpu.memory_space<vmem>>, vector<1x128xf32>
    %37 = vector.broadcast %36 : vector<1x128xf32> to vector<8x128xf32>
    %38 = arith.addf %35, %37 : vector<8x128xf32>
    %c0_28 = arith.constant 0 : index
    %c0_29 = arith.constant 0 : index
    %39 = vector.load %arg12[%c0_28, %c0_29] : memref<8x128xf32, #tpu.memory_space<vmem>>, vector<8x128xf32>
    tpu.vector_store %arg12[%c0_28, %c0_29], %38 {strides = array<i32>} : memref<8x128xf32, #tpu.memory_space<vmem>>, vector<8x128xf32>,
    return
  }
  func.func @transform_0(%arg0: i32) -> (i32, i32) {
    %c0_i32 = arith.constant 0 : i32
    %c0_i32_0 = arith.constant 0 : i32
    return %arg0, %c0_i32 : i32, i32
  }
  func.func @transform_1(%arg0: i32) -> (i32, i32) {
    %c0_i32 = arith.constant 0 : i32
    %c0_i32_0 = arith.constant 0 : i32
    return %arg0, %c0_i32 : i32, i32
  }
  func.func @transform_2(%arg0: i32) -> (i32, i32) {
    %c0_i32 = arith.constant 0 : i32
    %c0_i32_0 = arith.constant 0 : i32
    %c0_i32_1 = arith.constant 0 : i32
    return %c0_i32, %c0_i32_0 : i32, i32
  }
  func.func @transform_3(%arg0: i32) -> (i32, i32) {
    %c0_i32 = arith.constant 0 : i32
    %c0_i32_0 = arith.constant 0 : i32
    %c0_i32_1 = arith.constant 0 : i32
    return %c0_i32, %c0_i32_0 : i32, i32
  }
  func.func @transform_4(%arg0: i32) -> (i32, i32) {
    %c0_i32 = arith.constant 0 : i32
    %c0_i32_0 = arith.constant 0 : i32
    %c0_i32_1 = arith.constant 0 : i32
    return %c0_i32, %c0_i32_0 : i32, i32
  }
  func.func @transform_5(%arg0: i32) -> (i32, i32) {
    %c0_i32 = arith.constant 0 : i32
    %c0_i32_0 = arith.constant 0 : i32
    %c0_i32_1 = arith.constant 0 : i32
    return %c0_i32, %c0_i32_0 : i32, i32
  }
  func.func @transform_6(%arg0: i32) -> (i32, i32) {
    %c0_i32 = arith.constant 0 : i32
    %c0_i32_0 = arith.constant 0 : i32
    %c0_i32_1 = arith.constant 0 : i32
    return %c0_i32, %c0_i32_0 : i32, i32
  }
  func.func @transform_7(%arg0: i32) -> (i32, i32) {
    %c0_i32 = arith.constant 0 : i32
    %c0_i32_0 = arith.constant 0 : i32
    %c0_i32_1 = arith.constant 0 : i32
    return %c0_i32, %c0_i32_0 : i32, i32
  }
  func.func @transform_8(%arg0: i32) -> (i32, i32) {
    %c0_i32 = arith.constant 0 : i32
    %c0_i32_0 = arith.constant 0 : i32
    %c0_i32_1 = arith.constant 0 : i32
    return %c0_i32, %c0_i32_0 : i32, i32
  }
  func.func @transform_9(%arg0: i32) -> (i32, i32) {
    %c0_i32 = arith.constant 0 : i32
    %c0_i32_0 = arith.constant 0 : i32
    %c0_i32_1 = arith.constant 0 : i32
    return %c0_i32, %c0_i32_0 : i32, i32
  }
  func.func @transform_10(%arg0: i32) -> (i32, i32) {
    %c0_i32 = arith.constant 0 : i32
    %c0_i32_0 = arith.constant 0 : i32
    %c0_i32_1 = arith.constant 0 : i32
    return %c0_i32, %c0_i32_0 : i32, i32
  }
  func.func @transform_11(%arg0: i32) -> (i32, i32) {
    %c0_i32 = arith.constant 0 : i32
    %c0_i32_0 = arith.constant 0 : i32
    return %arg0, %c0_i32 : i32, i32
  }
}

</mosaic_0001>

<llo_original>
// kernel: tpu_custom_call.1
$region0: #{tpu_custom_call.1}
  #allocation0 [shape = 'u32[]', space=smem, size = 0x4, offset = 0x4, fixed_abs, tag = 'smem constant byte address 0x4 - core index']
  #allocation1 [shape = 'u32[72,128]{1,0:T(1,128)}', space=vmem, size = 0x9000, scoped, tag = 'internal scratch']
  %s0 = inlined_call_operand.hbm [shape: bf16[8,128], index: 0, kind: input, shape index: {}]
  %s1 = inlined_call_operand.hbm [shape: bf16[8,128], index: 1, kind: input, shape index: {}]
  %s2 = inlined_call_operand.hbm [shape: bf16[128,128], index: 2, kind: input, shape index: {}]
  %s3 = inlined_call_operand.hbm [shape: bf16[128,128], index: 3, kind: input, shape index: {}]
  %s4 = inlined_call_operand.hbm [shape: bf16[128,128], index: 4, kind: input, shape index: {}]
  %s5 = inlined_call_operand.hbm [shape: bf16[128,128], index: 5, kind: input, shape index: {}]
  %s6 = inlined_call_operand.vmem [shape: f32[1,128], index: 6, kind: input, shape index: {}]
  %s7 = inlined_call_operand.hbm [shape: bf16[128,128], index: 7, kind: input, shape index: {}]
  %s8 = inlined_call_operand.vmem [shape: f32[1,128], index: 8, kind: input, shape index: {}]
  %s9 = inlined_call_operand.hbm [shape: bf16[128,128], index: 9, kind: input, shape index: {}]
  %s10 = inlined_call_operand.vmem [shape: f32[1,128], index: 10, kind: input, shape index: {}]
  %s11 = inlined_call_operand.hbm [shape: f32[8,128], index: 11, kind: output, shape index: {}]
  %s12 = sld [smem:[#allocation0]]
  $region86: #{tpu_custom_call.1} parent=0
    _
  %s14 = ssub.s32 1, %s12
  %s15 = scalar_select 0, %s14, %s12
  $region1: #{tpu_custom_call.1} parent=0
    #allocation2 [shape = 'u8[2048]{0}', space=vmem, size = 0x800, scoped, tag = 'input window, operand 0, single buffered']
    #allocation3 [shape = 's32[1]{0}', space=sflag, size = 0x4, scoped, tag = 'scoped memory for tpu_custom_call.1']
    #allocation4 [shape = 's32[1]{0}', space=sflag, size = 0x4, scoped, tag = 'scoped memory for tpu_custom_call.1']
    #allocation5 [shape = 'u8[2048]{0}', space=vmem, size = 0x800, scoped, tag = 'input window, operand 1, single buffered']
    #allocation6 [shape = 's32[1]{0}', space=sflag, size = 0x4, scoped, tag = 'scoped memory for tpu_custom_call.1']
    #allocation7 [shape = 'u8[32768]{0}', space=vmem, size = 0x8000, scoped, tag = 'input window, operand 2, single buffered']
    #allocation8 [shape = 'u8[32768]{0}', space=vmem, size = 0x8000, scoped, tag = 'input window, operand 3, single buffered']
    #allocation9 [shape = 's32[1]{0}', space=sflag, size = 0x4, scoped, tag = 'scoped memory for tpu_custom_call.1']
    #allocation10 [shape = 'u8[32768]{0}', space=vmem, size = 0x8000, scoped, tag = 'input window, operand 4, single buffered']
    #allocation11 [shape = 'u8[32768]{0}', space=vmem, size = 0x8000, scoped, tag = 'input window, operand 5, single buffered']
    #allocation12 [shape = 's32[1]{0}', space=sflag, size = 0x4, scoped, tag = 'scoped memory for tpu_custom_call.1']
    #allocation13 [shape = 'u8[32768]{0}', space=vmem, size = 0x8000, scoped, tag = 'input window, operand 7, single buffered']
    #allocation14 [shape = 'u8[32768]{0}', space=vmem, size = 0x8000, scoped, tag = 'input window, operand 9, single buffered']
    #allocation15 [shape = 's32[1]{0}', space=sflag, size = 0x4, scoped, tag = 'scoped memory for tpu_custom_call.1']
    #allocation16 [shape = 'u8[4096]{0}', space=vmem, size = 0x1000, scoped, tag = 'output window, operand 0, single buffered']
    %16 = vsyncpa [#allocation3], 0
    %17 = vsyncpa [#allocation6], 0
    %18 = vsyncpa [#allocation9], 0
    %19 = vsyncpa [#allocation12], 0
    %20 = vsyncpa [#allocation15], 0
    %21 = vsyncpa [#allocation4], 0
    // Predicated region
    $region2: #{tpu_custom_call.1} parent=1 // pred_check
      _
    $region3: #{tpu_custom_call.1} parent=1 // pred_check_branch
      %23 = sbr.rel (0) target = $region5
    $region4: #{tpu_custom_call.1} parent=1 // pred_region
      %25 = vsyncadd [#allocation3], 0
      %s27 = sshll.u32 %s0, 4
      %s28 = int_to_ptr.hbm [resolvable:$true] %s27
      %s29 = sshll.u32 [#allocation2], 4
      %s30 = int_to_ptr.vmem [resolvable:$true] %s29
      %32 = dma.hbm_to_vmem [thread:$0]  %s28, 64, %s30, [#allocation3]
    $region5: #{tpu_custom_call.1} parent=1 // pred_fallthru
      _
    // Predicated region
    $region6: #{tpu_custom_call.1} parent=1 // pred_check
      _
    $region7: #{tpu_custom_call.1} parent=1 // pred_check_branch
      %34 = sbr.rel (0) target = $region9
    $region8: #{tpu_custom_call.1} parent=1 // pred_region
      %36 = vsyncadd [#allocation6], 0
      %s38 = sshll.u32 %s1, 4
      %s39 = int_to_ptr.hbm [resolvable:$true] %s38
      %s40 = sshll.u32 [#allocation5], 4
      %s41 = int_to_ptr.vmem [resolvable:$true] %s40
      %43 = dma.hbm_to_vmem [thread:$0]  %s39, 64, %s41, [#allocation6]
    $region9: #{tpu_custom_call.1} parent=1 // pred_fallthru
      _
    // Predicated region
    $region10: #{tpu_custom_call.1} parent=1 // pred_check
      _
    $region11: #{tpu_custom_call.1} parent=1 // pred_check_branch
      %45 = sbr.rel (0) target = $region13
    $region12: #{tpu_custom_call.1} parent=1 // pred_region
      %47 = vsyncadd [#allocation6], 0
      %s48 = sshll.u32 %s2, 4
      %s49 = int_to_ptr.hbm [resolvable:$true] %s48
      %s50 = sshll.u32 [#allocation7], 4
      %s51 = int_to_ptr.vmem [resolvable:$true] %s50
      %56 = dma.hbm_to_vmem [thread:$0]  %s49, 1024, %s51, [#allocation6], 64, 64, 4
    $region13: #{tpu_custom_call.1} parent=1 // pred_fallthru
      _
    // Predicated region
    $region14: #{tpu_custom_call.1} parent=1 // pred_check
      _
    $region15: #{tpu_custom_call.1} parent=1 // pred_check_branch
      %58 = sbr.rel (0) target = $region17
    $region16: #{tpu_custom_call.1} parent=1 // pred_region
      %60 = vsyncadd [#allocation9], 0
      %s61 = sshll.u32 %s3, 4
      %s62 = int_to_ptr.hbm [resolvable:$true] %s61
      %s63 = sshll.u32 [#allocation8], 4
      %s64 = int_to_ptr.vmem [resolvable:$true] %s63
      %69 = dma.hbm_to_vmem [thread:$0]  %s62, 1024, %s64, [#allocation9], 64, 64, 4
    $region17: #{tpu_custom_call.1} parent=1 // pred_fallthru
      _
    // Predicated region
    $region18: #{tpu_custom_call.1} parent=1 // pred_check
      _
    $region19: #{tpu_custom_call.1} parent=1 // pred_check_branch
      %71 = sbr.rel (0) target = $region21
    $region20: #{tpu_custom_call.1} parent=1 // pred_region
      %73 = vsyncadd [#allocation9], 0
      %s74 = sshll.u32 %s4, 4
      %s75 = int_to_ptr.hbm [resolvable:$true] %s74
      %s76 = sshll.u32 [#allocation10], 4
      %s77 = int_to_ptr.vmem [resolvable:$true] %s76
      %82 = dma.hbm_to_vmem [thread:$0]  %s75, 1024, %s77, [#allocation9], 64, 64, 4
    $region21: #{tpu_custom_call.1} parent=1 // pred_fallthru
      _
    // Predicated region
    $region22: #{tpu_custom_call.1} parent=1 // pred_check
      _
    $region23: #{tpu_custom_call.1} parent=1 // pred_check_branch
      %84 = sbr.rel (0) target = $region25
    $region24: #{tpu_custom_call.1} parent=1 // pred_region
      %86 = vsyncadd [#allocation12], 0
      %s87 = sshll.u32 %s5, 4
      %s88 = int_to_ptr.hbm [resolvable:$true] %s87
      %s89 = sshll.u32 [#allocation11], 4
      %s90 = int_to_ptr.vmem [resolvable:$true] %s89
      %95 = dma.hbm_to_vmem [thread:$0]  %s88, 1024, %s90, [#allocation12], 64, 64, 4
    $region25: #{tpu_custom_call.1} parent=1 // pred_fallthru
      _
    // Predicated region
    $region26: #{tpu_custom_call.1} parent=1 // pred_check
      _
    $region27: #{tpu_custom_call.1} parent=1 // pred_check_branch
      %97 = sbr.rel (0) target = $region29
    $region28: #{tpu_custom_call.1} parent=1 // pred_region
      _
    $region29: #{tpu_custom_call.1} parent=1 // pred_fallthru
      _
    // Predicated region
    $region30: #{tpu_custom_call.1} parent=1 // pred_check
      _
    $region31: #{tpu_custom_call.1} parent=1 // pred_check_branch
      %99 = sbr.rel (0) target = $region33
    $region32: #{tpu_custom_call.1} parent=1 // pred_region
      %101 = vsyncadd [#allocation12], 0
      %s102 = sshll.u32 %s7, 4
      %s103 = int_to_ptr.hbm [resolvable:$true] %s102
      %s104 = sshll.u32 [#allocation13], 4
      %s105 = int_to_ptr.vmem [resolvable:$true] %s104
      %110 = dma.hbm_to_vmem [thread:$0]  %s103, 1024, %s105, [#allocation12], 64, 64, 4
    $region33: #{tpu_custom_call.1} parent=1 // pred_fallthru
      _
    // Predicated region
    $region34: #{tpu_custom_call.1} parent=1 // pred_check
      _
    $region35: #{tpu_custom_call.1} parent=1 // pred_check_branch
      %112 = sbr.rel (0) target = $region37
    $region36: #{tpu_custom_call.1} parent=1 // pred_region
      _
    $region37: #{tpu_custom_call.1} parent=1 // pred_fallthru
      _
    // Predicated region
    $region38: #{tpu_custom_call.1} parent=1 // pred_check
      _
    $region39: #{tpu_custom_call.1} parent=1 // pred_check_branch
      %114 = sbr.rel (0) target = $region41
    $region40: #{tpu_custom_call.1} parent=1 // pred_region
      %116 = vsyncadd [#allocation15], 0
      %s117 = sshll.u32 %s9, 4
      %s118 = int_to_ptr.hbm [resolvable:$true] %s117
      %s119 = sshll.u32 [#allocation14], 4
      %s120 = int_to_ptr.vmem [resolvable:$true] %s119
      %125 = dma.hbm_to_vmem [thread:$0]  %s118, 1024, %s120, [#allocation15], 64, 64, 4
    $region41: #{tpu_custom_call.1} parent=1 // pred_fallthru
      _
    // Predicated region
    $region42: #{tpu_custom_call.1} parent=1 // pred_check
      _
    $region43: #{tpu_custom_call.1} parent=1 // pred_check_branch
      %127 = sbr.rel (0) target = $region45
    $region44: #{tpu_custom_call.1} parent=1 // pred_region
      _
    $region45: #{tpu_custom_call.1} parent=1 // pred_fallthru
      _
    // Predicated region
    $region46: #{tpu_custom_call.1} parent=1 // pred_check
      _
    $region47: #{tpu_custom_call.1} parent=1 // pred_check_branch
      %129 = sbr.rel (0) target = $region49
    $region48: #{tpu_custom_call.1} parent=1 // pred_region
      %131 = dma.done [#allocation3], 64
    $region49: #{tpu_custom_call.1} parent=1 // pred_fallthru
      _
    // Predicated region
    $region50: #{tpu_custom_call.1} parent=1 // pred_check
      _
    $region51: #{tpu_custom_call.1} parent=1 // pred_check_branch
      %133 = sbr.rel (0) target = $region53
    $region52: #{tpu_custom_call.1} parent=1 // pred_region
      %135 = dma.done [#allocation6], 64
    $region53: #{tpu_custom_call.1} parent=1 // pred_fallthru
      _
    // Predicated region
    $region54: #{tpu_custom_call.1} parent=1 // pred_check
      _
    $region55: #{tpu_custom_call.1} parent=1 // pred_check_branch
      %137 = sbr.rel (0) target = $region57
    $region56: #{tpu_custom_call.1} parent=1 // pred_region
      %139 = dma.done [#allocation6], 1024
    $region57: #{tpu_custom_call.1} parent=1 // pred_fallthru
      _
    // Predicated region
    $region58: #{tpu_custom_call.1} parent=1 // pred_check
      _
    $region59: #{tpu_custom_call.1} parent=1 // pred_check_branch
      %141 = sbr.rel (0) target = $region61
    $region60: #{tpu_custom_call.1} parent=1 // pred_region
      %143 = dma.done [#allocation9], 1024
    $region61: #{tpu_custom_call.1} parent=1 // pred_fallthru
      _
    // Predicated region
    $region62: #{tpu_custom_call.1} parent=1 // pred_check
      _
    $region63: #{tpu_custom_call.1} parent=1 // pred_check_branch
      %145 = sbr.rel (0) target = $region65
    $region64: #{tpu_custom_call.1} parent=1 // pred_region
      %147 = dma.done [#allocation9], 1024
    $region65: #{tpu_custom_call.1} parent=1 // pred_fallthru
      _
    // Predicated region
    $region66: #{tpu_custom_call.1} parent=1 // pred_check
      _
    $region67: #{tpu_custom_call.1} parent=1 // pred_check_branch
      %149 = sbr.rel (0) target = $region69
    $region68: #{tpu_custom_call.1} parent=1 // pred_region
      %151 = dma.done [#allocation12], 1024
    $region69: #{tpu_custom_call.1} parent=1 // pred_fallthru
      _
    // Predicated region
    $region70: #{tpu_custom_call.1} parent=1 // pred_check
      _
    $region71: #{tpu_custom_call.1} parent=1 // pred_check_branch
      %153 = sbr.rel (0) target = $region73
    $region72: #{tpu_custom_call.1} parent=1 // pred_region
      %155 = dma.done [#allocation12], 1024
    $region73: #{tpu_custom_call.1} parent=1 // pred_fallthru
      _
    // Predicated region
    $region74: #{tpu_custom_call.1} parent=1 // pred_check
      _
    $region75: #{tpu_custom_call.1} parent=1 // pred_check_branch
      %157 = sbr.rel (0) target = $region77
    $region76: #{tpu_custom_call.1} parent=1 // pred_region
      %159 = dma.done [#allocation15], 1024
    $region77: #{tpu_custom_call.1} parent=1 // pred_fallthru
      _
    %v160 = vld [vmem:[#allocation2] sm:$0xf]
    %v161 = vld [vmem:[#allocation5] sm:$0xf]
    %v162 = vunpack.c.l.bf16 %v160
    %v163 = vunpack.c.l.bf16 %v161
    %v164 = vsub.f32 %v162, %v163
    %v165 = vand.u32 2147483647, %v164
    %v166 = vpack.c.bf16 %v165, %v165
    %v167 = vmul.f32 %v162, %v163
    %v168 = vpack.c.bf16 %v167, %v167
    %v169 = vld [vmem:[#allocation7] sm:$0xf]
    %v170 = vld [vmem:[#allocation7 + $0x4] sm:$0xf]
    %v171 = vld [vmem:[#allocation7 + $0x8] sm:$0xf]
    %v172 = vld [vmem:[#allocation7 + $0xc] sm:$0xf]
    %v173 = vld [vmem:[#allocation7 + $0x10] sm:$0xf]
    %v174 = vld [vmem:[#allocation7 + $0x14] sm:$0xf]
    %v175 = vld [vmem:[#allocation7 + $0x18] sm:$0xf]
    %v176 = vld [vmem:[#allocation7 + $0x1c] sm:$0xf]
    %v177 = vld [vmem:[#allocation7 + $0x20] sm:$0xf]
    %v178 = vld [vmem:[#allocation7 + $0x24] sm:$0xf]
    %v179 = vld [vmem:[#allocation7 + $0x28] sm:$0xf]
    %v180 = vld [vmem:[#allocation7 + $0x2c] sm:$0xf]
    %v181 = vld [vmem:[#allocation7 + $0x30] sm:$0xf]
    %v182 = vld [vmem:[#allocation7 + $0x34] sm:$0xf]
    %v183 = vld [vmem:[#allocation7 + $0x38] sm:$0xf]
    %v184 = vld [vmem:[#allocation7 + $0x3c] sm:$0xf]
    %v185 = vld [vmem:[#allocation8] sm:$0xf]
    %v186 = vld [vmem:[#allocation8 + $0x4] sm:$0xf]
    %v187 = vld [vmem:[#allocation8 + $0x8] sm:$0xf]
    %v188 = vld [vmem:[#allocation8 + $0xc] sm:$0xf]
    %v189 = vld [vmem:[#allocation8 + $0x10] sm:$0xf]
    %v190 = vld [vmem:[#allocation8 + $0x14] sm:$0xf]
    %v191 = vld [vmem:[#allocation8 + $0x18] sm:$0xf]
    %v192 = vld [vmem:[#allocation8 + $0x1c] sm:$0xf]
    %v193 = vld [vmem:[#allocation8 + $0x20] sm:$0xf]
    %v194 = vld [vmem:[#allocation8 + $0x24] sm:$0xf]
    %v195 = vld [vmem:[#allocation8 + $0x28] sm:$0xf]
    %v196 = vld [vmem:[#allocation8 + $0x2c] sm:$0xf]
    %v197 = vld [vmem:[#allocation8 + $0x30] sm:$0xf]
    %v198 = vld [vmem:[#allocation8 + $0x34] sm:$0xf]
    %v199 = vld [vmem:[#allocation8 + $0x38] sm:$0xf]
    %v200 = vld [vmem:[#allocation8 + $0x3c] sm:$0xf]
    %v217 = vunpack.c.l.b16 %v185
    %v218 = vunpack.c.l.b16 %v186
    %v219 = vunpack.c.l.b16 %v187
    %v220 = vunpack.c.l.b16 %v188
    %v221 = vunpack.c.l.b16 %v189
    %v222 = vunpack.c.l.b16 %v190
    %v223 = vunpack.c.l.b16 %v191
    %v224 = vunpack.c.l.b16 %v192
    %v225 = vunpack.c.l.b16 %v193
    %v226 = vunpack.c.l.b16 %v194
    %v227 = vunpack.c.l.b16 %v195
    %v228 = vunpack.c.l.b16 %v196
    %v229 = vunpack.c.l.b16 %v197
    %v230 = vunpack.c.l.b16 %v198
    %v231 = vunpack.c.l.b16 %v199
    %v232 = vunpack.c.l.b16 %v200
    %v233 = vpack.c.b16 %v218, %v217
    %v234 = vpack.c.b16 %v220, %v219
    %v235 = vpack.c.b16 %v222, %v221
    %v236 = vpack.c.b16 %v224, %v223
    %v237 = vpack.c.b16 %v226, %v225
    %v238 = vpack.c.b16 %v228, %v227
    %v239 = vpack.c.b16 %v230, %v229
    %v240 = vpack.c.b16 %v232, %v231
    %249 = vmatpush.bf16.msra.mxu0 %v240
    %250 = vmatpush.bf16.msra.mxu0 %v239
    %251 = vmatpush.bf16.msra.mxu0 %v238
    %252 = vmatpush.bf16.msra.mxu0 %v237
    %253 = vmatpush.bf16.msra.mxu0 %v236
    %254 = vmatpush.bf16.msra.mxu0 %v235
    %255 = vmatpush.bf16.msra.mxu0 %v234
    %256 = vmatpush.bf16.msra.mxu0 %v233
    %257 = vmatmul.bf16.gmra.mxu0 %v161
    %v258 = vpop.f32.mrf.mxu0
    %v259 = vadd.f32 0.0, %v258
    %v260 = vpop.f32.mrf.mxu0
    %261 = vdwg.mxu0
    %v278 = vunpack.c.l.b16 %v169
    %v279 = vunpack.c.l.b16 %v170
    %v280 = vunpack.c.l.b16 %v171
    %v281 = vunpack.c.l.b16 %v172
    %v282 = vunpack.c.l.b16 %v173
    %v283 = vunpack.c.l.b16 %v174
    %v284 = vunpack.c.l.b16 %v175
    %v285 = vunpack.c.l.b16 %v176
    %v286 = vunpack.c.l.b16 %v177
    %v287 = vunpack.c.l.b16 %v178
    %v288 = vunpack.c.l.b16 %v179
    %v289 = vunpack.c.l.b16 %v180
    %v290 = vunpack.c.l.b16 %v181
    %v291 = vunpack.c.l.b16 %v182
    %v292 = vunpack.c.l.b16 %v183
    %v293 = vunpack.c.l.b16 %v184
    %v294 = vpack.c.b16 %v279, %v278
    %v295 = vpack.c.b16 %v281, %v280
    %v296 = vpack.c.b16 %v283, %v282
    %v297 = vpack.c.b16 %v285, %v284
    %v298 = vpack.c.b16 %v287, %v286
    %v299 = vpack.c.b16 %v289, %v288
    %v300 = vpack.c.b16 %v291, %v290
    %v301 = vpack.c.b16 %v293, %v292
    %310 = vmatpush.bf16.msra.mxu0 %v301
    %311 = vmatpush.bf16.msra.mxu0 %v300
    %312 = vmatpush.bf16.msra.mxu0 %v299
    %313 = vmatpush.bf16.msra.mxu0 %v298
    %314 = vmatpush.bf16.msra.mxu0 %v297
    %315 = vmatpush.bf16.msra.mxu0 %v296
    %316 = vmatpush.bf16.msra.mxu0 %v295
    %317 = vmatpush.bf16.msra.mxu0 %v294
    %318 = vmatmul.bf16.gmra.mxu0 %v160
    %v319 = vpop.f32.mrf.mxu0
    %v320 = vadd.f32 %v259, %v319
    %v321 = vpop.f32.mrf.mxu0
    %322 = vdwg.mxu0
    %v323 = vld [vmem:[#allocation10] sm:$0xf]
    %v324 = vld [vmem:[#allocation10 + $0x4] sm:$0xf]
    %v325 = vld [vmem:[#allocation10 + $0x8] sm:$0xf]
    %v326 = vld [vmem:[#allocation10 + $0xc] sm:$0xf]
    %v327 = vld [vmem:[#allocation10 + $0x10] sm:$0xf]
    %v328 = vld [vmem:[#allocation10 + $0x14] sm:$0xf]
    %v329 = vld [vmem:[#allocation10 + $0x18] sm:$0xf]
    %v330 = vld [vmem:[#allocation10 + $0x1c] sm:$0xf]
    %v331 = vld [vmem:[#allocation10 + $0x20] sm:$0xf]
    %v332 = vld [vmem:[#allocation10 + $0x24] sm:$0xf]
    %v333 = vld [vmem:[#allocation10 + $0x28] sm:$0xf]
    %v334 = vld [vmem:[#allocation10 + $0x2c] sm:$0xf]
    %v335 = vld [vmem:[#allocation10 + $0x30] sm:$0xf]
    %v336 = vld [vmem:[#allocation10 + $0x34] sm:$0xf]
    %v337 = vld [vmem:[#allocation10 + $0x38] sm:$0xf]
    %v338 = vld [vmem:[#allocation10 + $0x3c] sm:$0xf]
    %v355 = vunpack.c.l.b16 %v323
    %v356 = vunpack.c.l.b16 %v324
    %v357 = vunpack.c.l.b16 %v325
    %v358 = vunpack.c.l.b16 %v326
    %v359 = vunpack.c.l.b16 %v327
    %v360 = vunpack.c.l.b16 %v328
    %v361 = vunpack.c.l.b16 %v329
    %v362 = vunpack.c.l.b16 %v330
    %v363 = vunpack.c.l.b16 %v331
    %v364 = vunpack.c.l.b16 %v332
    %v365 = vunpack.c.l.b16 %v333
    %v366 = vunpack.c.l.b16 %v334
    %v367 = vunpack.c.l.b16 %v335
    %v368 = vunpack.c.l.b16 %v336
    %v369 = vunpack.c.l.b16 %v337
    %v370 = vunpack.c.l.b16 %v338
    %v371 = vpack.c.b16 %v356, %v355
    %v372 = vpack.c.b16 %v358, %v357
    %v373 = vpack.c.b16 %v360, %v359
    %v374 = vpack.c.b16 %v362, %v361
    %v375 = vpack.c.b16 %v364, %v363
    %v376 = vpack.c.b16 %v366, %v365
    %v377 = vpack.c.b16 %v368, %v367
    %v378 = vpack.c.b16 %v370, %v369
    %387 = vmatpush.bf16.msra.mxu0 %v378
    %388 = vmatpush.bf16.msra.mxu0 %v377
    %389 = vmatpush.bf16.msra.mxu0 %v376
    %390 = vmatpush.bf16.msra.mxu0 %v375
    %391 = vmatpush.bf16.msra.mxu0 %v374
    %392 = vmatpush.bf16.msra.mxu0 %v373
    %393 = vmatpush.bf16.msra.mxu0 %v372
    %394 = vmatpush.bf16.msra.mxu0 %v371
    %395 = vmatmul.bf16.gmra.mxu0 %v166
    %v396 = vpop.f32.mrf.mxu0
    %v397 = vadd.f32 0.0, %v396
    %v398 = vpop.f32.mrf.mxu0
    %399 = vdwg.mxu0
    %v400 = vadd.f32 %v320, %v397
    %v401 = vld [vmem:[#allocation11] sm:$0xf]
    %v402 = vld [vmem:[#allocation11 + $0x4] sm:$0xf]
    %v403 = vld [vmem:[#allocation11 + $0x8] sm:$0xf]
    %v404 = vld [vmem:[#allocation11 + $0xc] sm:$0xf]
    %v405 = vld [vmem:[#allocation11 + $0x10] sm:$0xf]
    %v406 = vld [vmem:[#allocation11 + $0x14] sm:$0xf]
    %v407 = vld [vmem:[#allocation11 + $0x18] sm:$0xf]
    %v408 = vld [vmem:[#allocation11 + $0x1c] sm:$0xf]
    %v409 = vld [vmem:[#allocation11 + $0x20] sm:$0xf]
    %v410 = vld [vmem:[#allocation11 + $0x24] sm:$0xf]
    %v411 = vld [vmem:[#allocation11 + $0x28] sm:$0xf]
    %v412 = vld [vmem:[#allocation11 + $0x2c] sm:$0xf]
    %v413 = vld [vmem:[#allocation11 + $0x30] sm:$0xf]
    %v414 = vld [vmem:[#allocation11 + $0x34] sm:$0xf]
    %v415 = vld [vmem:[#allocation11 + $0x38] sm:$0xf]
    %v416 = vld [vmem:[#allocation11 + $0x3c] sm:$0xf]
    %v433 = vunpack.c.l.b16 %v401
    %v434 = vunpack.c.l.b16 %v402
    %v435 = vunpack.c.l.b16 %v403
    %v436 = vunpack.c.l.b16 %v404
    %v437 = vunpack.c.l.b16 %v405
    %v438 = vunpack.c.l.b16 %v406
    %v439 = vunpack.c.l.b16 %v407
    %v440 = vunpack.c.l.b16 %v408
    %v441 = vunpack.c.l.b16 %v409
    %v442 = vunpack.c.l.b16 %v410
    %v443 = vunpack.c.l.b16 %v411
    %v444 = vunpack.c.l.b16 %v412
    %v445 = vunpack.c.l.b16 %v413
    %v446 = vunpack.c.l.b16 %v414
    %v447 = vunpack.c.l.b16 %v415
    %v448 = vunpack.c.l.b16 %v416
    %v449 = vpack.c.b16 %v434, %v433
    %v450 = vpack.c.b16 %v436, %v435
    %v451 = vpack.c.b16 %v438, %v437
    %v452 = vpack.c.b16 %v440, %v439
    %v453 = vpack.c.b16 %v442, %v441
    %v454 = vpack.c.b16 %v444, %v443
    %v455 = vpack.c.b16 %v446, %v445
    %v456 = vpack.c.b16 %v448, %v447
    %465 = vmatpush.bf16.msra.mxu0 %v456
    %466 = vmatpush.bf16.msra.mxu0 %v455
    %467 = vmatpush.bf16.msra.mxu0 %v454
    %468 = vmatpush.bf16.msra.mxu0 %v453
    %469 = vmatpush.bf16.msra.mxu0 %v452
    %470 = vmatpush.bf16.msra.mxu0 %v451
    %471 = vmatpush.bf16.msra.mxu0 %v450
    %472 = vmatpush.bf16.msra.mxu0 %v449
    %473 = vmatmul.bf16.gmra.mxu0 %v168
    %v474 = vpop.f32.mrf.mxu0
    %v475 = vadd.f32 0.0, %v474
    %v476 = vpop.f32.mrf.mxu0
    %477 = vdwg.mxu0
    %v478 = vadd.f32 %v400, %v475
    %v479 = vld [vmem:[%s6] sm:$0x1]
    %v481 = vperm.slane %v479, 0
    %v483 = vadd.f32 %v478, %v481
    %v484 = vmax.f32 %v483, 0.0
    %v485 = vpack.c.bf16 %v484, %v484
    %v486 = vld [vmem:[#allocation13] sm:$0xf]
    %v487 = vld [vmem:[#allocation13 + $0x4] sm:$0xf]
    %v488 = vld [vmem:[#allocation13 + $0x8] sm:$0xf]
    %v489 = vld [vmem:[#allocation13 + $0xc] sm:$0xf]
    %v490 = vld [vmem:[#allocation13 + $0x10] sm:$0xf]
    %v491 = vld [vmem:[#allocation13 + $0x14] sm:$0xf]
    %v492 = vld [vmem:[#allocation13 + $0x18] sm:$0xf]
    %v493 = vld [vmem:[#allocation13 + $0x1c] sm:$0xf]
    %v494 = vld [vmem:[#allocation13 + $0x20] sm:$0xf]
    %v495 = vld [vmem:[#allocation13 + $0x24] sm:$0xf]
    %v496 = vld [vmem:[#allocation13 + $0x28] sm:$0xf]
    %v497 = vld [vmem:[#allocation13 + $0x2c] sm:$0xf]
    %v498 = vld [vmem:[#allocation13 + $0x30] sm:$0xf]
    %v499 = vld [vmem:[#allocation13 + $0x34] sm:$0xf]
    %v500 = vld [vmem:[#allocation13 + $0x38] sm:$0xf]
    %v501 = vld [vmem:[#allocation13 + $0x3c] sm:$0xf]
    %v502 = vld [vmem:[%s8] sm:$0x1]
    %v504 = vperm.slane %v502, 0
    %v522 = vunpack.c.l.b16 %v486
    %v523 = vunpack.c.l.b16 %v487
    %v524 = vunpack.c.l.b16 %v488
    %v525 = vunpack.c.l.b16 %v489
    %v526 = vunpack.c.l.b16 %v490
    %v527 = vunpack.c.l.b16 %v491
    %v528 = vunpack.c.l.b16 %v492
    %v529 = vunpack.c.l.b16 %v493
    %v530 = vunpack.c.l.b16 %v494
    %v531 = vunpack.c.l.b16 %v495
    %v532 = vunpack.c.l.b16 %v496
    %v533 = vunpack.c.l.b16 %v497
    %v534 = vunpack.c.l.b16 %v498
    %v535 = vunpack.c.l.b16 %v499
    %v536 = vunpack.c.l.b16 %v500
    %v537 = vunpack.c.l.b16 %v501
    %v538 = vpack.c.b16 %v523, %v522
    %v539 = vpack.c.b16 %v525, %v524
    %v540 = vpack.c.b16 %v527, %v526
    %v541 = vpack.c.b16 %v529, %v528
    %v542 = vpack.c.b16 %v531, %v530
    %v543 = vpack.c.b16 %v533, %v532
    %v544 = vpack.c.b16 %v535, %v534
    %v545 = vpack.c.b16 %v537, %v536
    %554 = vmatpush.bf16.msra.mxu0 %v545
    %555 = vmatpush.bf16.msra.mxu0 %v544
    %556 = vmatpush.bf16.msra.mxu0 %v543
    %557 = vmatpush.bf16.msra.mxu0 %v542
    %558 = vmatpush.bf16.msra.mxu0 %v541
    %559 = vmatpush.bf16.msra.mxu0 %v540
    %560 = vmatpush.bf16.msra.mxu0 %v539
    %561 = vmatpush.bf16.msra.mxu0 %v538
    %562 = vmatmul.bf16.gmra.mxu0 %v485
    %v563 = vpop.f32.mrf.mxu0
    %v564 = vadd.f32 %v504, %v563
    %v565 = vpop.f32.mrf.mxu0
    %566 = vdwg.mxu0
    %v567 = vmax.f32 %v564, 0.0
    %v568 = vpack.c.bf16 %v567, %v567
    %v569 = vld [vmem:[#allocation14] sm:$0xf]
    %v570 = vld [vmem:[#allocation14 + $0x4] sm:$0xf]
    %v571 = vld [vmem:[#allocation14 + $0x8] sm:$0xf]
    %v572 = vld [vmem:[#allocation14 + $0xc] sm:$0xf]
    %v573 = vld [vmem:[#allocation14 + $0x10] sm:$0xf]
    %v574 = vld [vmem:[#allocation14 + $0x14] sm:$0xf]
    %v575 = vld [vmem:[#allocation14 + $0x18] sm:$0xf]
    %v576 = vld [vmem:[#allocation14 + $0x1c] sm:$0xf]
    %v577 = vld [vmem:[#allocation14 + $0x20] sm:$0xf]
    %v578 = vld [vmem:[#allocation14 + $0x24] sm:$0xf]
    %v579 = vld [vmem:[#allocation14 + $0x28] sm:$0xf]
    %v580 = vld [vmem:[#allocation14 + $0x2c] sm:$0xf]
    %v581 = vld [vmem:[#allocation14 + $0x30] sm:$0xf]
    %v582 = vld [vmem:[#allocation14 + $0x34] sm:$0xf]
    %v583 = vld [vmem:[#allocation14 + $0x38] sm:$0xf]
    %v584 = vld [vmem:[#allocation14 + $0x3c] sm:$0xf]
    %v585 = vld [vmem:[%s10] sm:$0x1]
    %v587 = vperm.slane %v585, 0
    %v605 = vunpack.c.l.b16 %v569
    %v606 = vunpack.c.l.b16 %v570
    %v607 = vunpack.c.l.b16 %v571
    %v608 = vunpack.c.l.b16 %v572
    %v609 = vunpack.c.l.b16 %v573
    %v610 = vunpack.c.l.b16 %v574
    %v611 = vunpack.c.l.b16 %v575
    %v612 = vunpack.c.l.b16 %v576
    %v613 = vunpack.c.l.b16 %v577
    %v614 = vunpack.c.l.b16 %v578
    %v615 = vunpack.c.l.b16 %v579
    %v616 = vunpack.c.l.b16 %v580
    %v617 = vunpack.c.l.b16 %v581
    %v618 = vunpack.c.l.b16 %v582
    %v619 = vunpack.c.l.b16 %v583
    %v620 = vunpack.c.l.b16 %v584
    %v621 = vpack.c.b16 %v606, %v605
    %v622 = vpack.c.b16 %v608, %v607
    %v623 = vpack.c.b16 %v610, %v609
    %v624 = vpack.c.b16 %v612, %v611
    %v625 = vpack.c.b16 %v614, %v613
    %v626 = vpack.c.b16 %v616, %v615
    %v627 = vpack.c.b16 %v618, %v617
    %v628 = vpack.c.b16 %v620, %v619
    %637 = vmatpush.bf16.msra.mxu0 %v628
    %638 = vmatpush.bf16.msra.mxu0 %v627
    %639 = vmatpush.bf16.msra.mxu0 %v626
    %640 = vmatpush.bf16.msra.mxu0 %v625
    %641 = vmatpush.bf16.msra.mxu0 %v624
    %642 = vmatpush.bf16.msra.mxu0 %v623
    %643 = vmatpush.bf16.msra.mxu0 %v622
    %644 = vmatpush.bf16.msra.mxu0 %v621
    %645 = vmatmul.bf16.gmra.mxu0 %v568
    %v646 = vpop.f32.mrf.mxu0
    %v647 = vadd.f32 %v587, %v646
    %v648 = vpop.f32.mrf.mxu0
    %649 = vdwg.mxu0
    %650 = vst [vmem:[#allocation16] sm:$0xff] %v647
    // Predicated region
    $region78: #{tpu_custom_call.1} parent=1 // pred_check
      _
    $region79: #{tpu_custom_call.1} parent=1 // pred_check_branch
      %652 = sbr.rel (0) target = $region81
    $region80: #{tpu_custom_call.1} parent=1 // pred_region
      %654 = vsyncadd [#allocation4], 0
      %s656 = sshll.u32 [#allocation16], 4
      %s657 = int_to_ptr.vmem [resolvable:$true] %s656
      %s658 = sshll.u32 %s11, 4
      %s659 = int_to_ptr.hbm [resolvable:$true] %s658
      %661 = dma.vmem_to_hbm [thread:$0]  %s657, 128, %s659, [#allocation4]
    $region81: #{tpu_custom_call.1} parent=1 // pred_fallthru
      _
    // Predicated region
    $region82: #{tpu_custom_call.1} parent=1 // pred_check
      _
    $region83: #{tpu_custom_call.1} parent=1 // pred_check_branch
      %663 = sbr.rel (0) target = $region85
    $region84: #{tpu_custom_call.1} parent=1 // pred_region
      %665 = dma.done [#allocation4], 128
    $region85: #{tpu_custom_call.1} parent=1 // pred_fallthru
      _
    %666 = vsyncpa [#allocation3], 1
    %667 = vsyncpa [#allocation6], 1
    %668 = vsyncpa [#allocation9], 1
    %669 = vsyncpa [#allocation12], 1
    %670 = vsyncpa [#allocation15], 1
    %671 = vsyncpa [#allocation4], 1

</llo_original>
